<compile_context>
chip_gen: v7x
topology: tpu7x:2x2x1
jax: 0.10.0
libtpu: 0.0.40
codegen_flags: <defaults>
</compile_context>

<pallas_src>
import functools
from typing import List, Tuple

import jax
import jax.numpy as jnp
from jax.experimental import pallas as pl
from jax.experimental.pallas import tpu as pltpu

_LANE = 128      # lane width: pad feature dims to multiples of this
_SUBLANE = 8     # sublane width: pad batch tiles to multiples of this


def _round_up(x: int, m: int) -> int:
    return ((x + m - 1) // m) * m


# ---------------------------------------------------------------------------
# Fused kernel: x -> [Linear+ReLU]*L -> concat(mu, log_sigma) head
# ---------------------------------------------------------------------------
def _fused_encoder_kernel(num_hidden, x_ref, *refs):
    """refs = (w0, b0, w1, b1, ..., w_head, b_head, out_ref).

    Weights are bf16 [in_pad, out_pad]; biases are f32 [1, out_pad];
    x / out are f32.  Accumulation is f32 on the MXU; bias-add + ReLU in f32.
    """
    out_ref = refs[-1]
    param_refs = refs[:-1]

    h = x_ref[...]                              # f32 [tile_m, in_pad]
    for li in range(num_hidden + 1):            # hidden layers, then fused head
        w = param_refs[2 * li][...]             # bf16 [in_pad_i, out_pad_i]
        b = param_refs[2 * li + 1][...]         # f32  [1, out_pad_i]
        acc = jnp.dot(h.astype(jnp.bfloat16), w,
                      preferred_element_type=jnp.float32) + b
        h = jnp.maximum(acc, 0.0) if li < num_hidden else acc
    out_ref[...] = h.astype(out_ref.dtype)


def _fused_encoder_call(x_pad: jax.Array, wb: Tuple[jax.Array, ...],
                        *, tile_m: int) -> jax.Array:
    batch_pad, in_pad = x_pad.shape
    head_pad = wb[-1].shape[1]
    num_hidden = len(wb) // 2 - 1
    grid = (batch_pad // tile_m,)

    # x / out tiled over batch; weights+biases full-extent, constant block
    # index -> they stay VMEM-resident across all batch tiles.
    in_specs = [pl.BlockSpec((tile_m, in_pad), lambda i: (i, 0))]
    in_specs += [pl.BlockSpec(a.shape, lambda i: (0, 0)) for a in wb]
    out_spec = pl.BlockSpec((tile_m, head_pad), lambda i: (i, 0))

    flops = sum(2 * batch_pad * wb[2 * li].shape[0] * wb[2 * li].shape[1]
                for li in range(num_hidden + 1))
    bytes_accessed = (x_pad.size * 4 + batch_pad * head_pad * 4
                      + sum(int(a.size) * a.dtype.itemsize for a in wb))

    return pl.pallas_call(
        functools.partial(_fused_encoder_kernel, num_hidden),
        out_shape=jax.ShapeDtypeStruct((batch_pad, head_pad), jnp.float32),
        grid_spec=pltpu.PrefetchScalarGridSpec(
            num_scalar_prefetch=0,
            grid=grid,
            in_specs=in_specs,
            out_specs=out_spec,
        ),
        compiler_params=pltpu.CompilerParams(
            # batch axis is embarrassingly parallel -> megacore / v7x 2xTC.
            dimension_semantics=("parallel",),
        ),
        cost_estimate=pl.CostEstimate(flops=flops, transcendentals=0,
                                      bytes_accessed=bytes_accessed),
    )(x_pad, *wb)


# ---------------------------------------------------------------------------
# Parameter init (mirrors torch.nn.Linear default init) + one-time prep
# ---------------------------------------------------------------------------
def init_net_encoder_params(key, input_size: int, layers: List[int], latent: int):
    """Weights stored as [in_features, out_features] (transpose of torch)."""
    sizes = [input_size] + list(layers)
    params = {"layers": []}
    for i in range(len(sizes) - 1):
        fan_in, fan_out = sizes[i], sizes[i + 1]
        key, kw, kb = jax.random.split(key, 3)
        bound = 1.0 / jnp.sqrt(fan_in)
        w = jax.random.uniform(kw, (fan_in, fan_out), jnp.float32, -bound, bound)
        b = jax.random.uniform(kb, (fan_out,), jnp.float32, -bound, bound)
        params["layers"].append((w, b))
    fan_in = sizes[-1]
    bound = 1.0 / jnp.sqrt(fan_in)
    key, k1, k2, k3, k4 = jax.random.split(key, 5)
    params["mu"] = (
        jax.random.uniform(k1, (fan_in, latent), jnp.float32, -bound, bound),
        jax.random.uniform(k2, (latent,), jnp.float32, -bound, bound),
    )
    params["log_sigma"] = (
        jax.random.uniform(k3, (fan_in, latent), jnp.float32, -bound, bound),
        jax.random.uniform(k4, (latent,), jnp.float32, -bound, bound),
    )
    return params


def prepare_encoder_params(params) -> Tuple[jax.Array, ...]:
    """One-time prep: concat mu/log_sigma heads, zero-pad all feature dims to
    multiples of 128, cast weights to bf16 (biases stay f32)."""
    w_mu, b_mu = params["mu"]
    w_ls, b_ls = params["log_sigma"]
    w_head = jnp.concatenate([w_mu, w_ls], axis=1)        # [hid, 2*latent]
    b_head = jnp.concatenate([b_mu, b_ls], axis=0)
    all_layers = list(params["layers"]) + [(w_head, b_head)]

    wb = []
    for (w, b) in all_layers:
        in_pad = _round_up(w.shape[0], _LANE)
        out_pad = _round_up(w.shape[1], _LANE)
        w_p = jnp.pad(w, ((0, in_pad - w.shape[0]),
                          (0, out_pad - w.shape[1]))).astype(jnp.bfloat16)
        b_p = jnp.pad(b, (0, out_pad - b.shape[0])).astype(
            jnp.float32).reshape(1, out_pad)
        wb.append(w_p)
        wb.append(b_p)
    return tuple(wb)


# ---------------------------------------------------------------------------
# Forward (mirrors NetEncoder.forward)
# ---------------------------------------------------------------------------
@functools.partial(jax.jit, static_argnames=("input_size", "latent"))
def net_encoder_forward(wb: Tuple[jax.Array, ...], x, *, input_size: int,
                        latent: int):
    # x.view(-1, input_size)
    h = x.reshape(-1, input_size).astype(jnp.float32)
    batch = h.shape[0]
    in_pad = wb[0].shape[0]

    # Batch tiling: small batches run as one grid step; large batches get
    # 256-row tiles to give the BlockSpec pipeline something to overlap.
    tile_m = min(_round_up(batch, _SUBLANE), 256)
    batch_pad = _round_up(batch, tile_m)
    x_pad = jnp.pad(h, ((0, batch_pad - batch), (0, in_pad - input_size)))

    out = _fused_encoder_call(x_pad, wb, tile_m=tile_m)   # [batch_pad, head_pad]

    mu = out[:batch, :latent]
    log_sig = out[:batch, latent:2 * latent]
    return mu, log_sig


# ---------------------------------------------------------------------------
# Pure-JAX reference (same bf16-input / f32-accumulate math as the kernel)
# ---------------------------------------------------------------------------
def net_encoder_ref(params, x, input_size):
    def mm(h, w, b):
        return jnp.dot(h.astype(jnp.bfloat16), w.astype(jnp.bfloat16),
                       preferred_element_type=jnp.float32) + b

    h = x.reshape(-1, input_size).astype(jnp.float32)
    for (w, b) in params["layers"]:
        h = jnp.maximum(mm(h, w, b), 0.0)
    w_mu, b_mu = params["mu"]
    w_ls, b_ls = params["log_sigma"]
    return mm(h, w_mu, b_mu), mm(h, w_ls, b_ls)


if __name__ == "__main__":
    key = jax.random.PRNGKey(0)

    # Module hyper-params (small, consistent with the MLP forward).
    input_size = 32
    hidden_layers = [64, 48]
    latent = 16

    kp, kx = jax.random.split(key)
    params = init_net_encoder_params(kp, input_size, hidden_layers, latent)
    wb = prepare_encoder_params(params)   # one-time: concat heads, pad, bf16

    # Input: any shape whose flatten yields (-1, input_size);
    # here (8, 2, 16) -> view(-1, 32) gives 8 rows of 32 features.
    x = jax.random.normal(kx, (8, 2, 16), jnp.float32)

    mu, log_sig = net_encoder_forward(wb, x, input_size=input_size,
                                      latent=latent)
    mu = jax.block_until_ready(mu)
    log_sig = jax.block_until_ready(log_sig)

    mu_ref, ls_ref = net_encoder_ref(params, x, input_size)
    assert mu.shape == (8, latent) and log_sig.shape == (8, latent)
    assert jnp.allclose(mu, mu_ref, atol=1e-2, rtol=1e-2)
    assert jnp.allclose(log_sig, ls_ref, atol=1e-2, rtol=1e-2)

    print("KERNEL_OK")
</pallas_src>

<mosaic_0001>
module attributes {stable_mosaic.version = 11 : i64} {
  func.func @_fused_encoder_kernel(%arg0: i32, %arg1: memref<8x128xf32, #tpu.memory_space<vmem>>, %arg2: memref<128x128xbf16, #tpu.memory_space<vmem>>, %arg3: memref<1x128xf32, #tpu.memory_space<vmem>>, %arg4: memref<128x128xbf16, #tpu.memory_space<vmem>>, %arg5: memref<1x128xf32, #tpu.memory_space<vmem>>, %arg6: memref<128x128xbf16, #tpu.memory_space<vmem>>, %arg7: memref<1x128xf32, #tpu.memory_space<vmem>>, %arg8: memref<8x128xf32, #tpu.memory_space<vmem>>) attributes {dimension_semantics = [#tpu.dimension_semantics<parallel>], iteration_bounds = array<i64: 1>, scalar_prefetch = 0 : i64, scratch_operands = 0 : i64, tpu.core_type = #tpu.core_type<tc>, window_params = [{transform_indices = @transform_0, window_bounds = array<i64: 8, 128>}, {pipeline_mode = #tpu.pipeline_mode<synchronous>, transform_indices = @transform_1, window_bounds = array<i64: 128, 128>}, {pipeline_mode = #tpu.pipeline_mode<synchronous>, transform_indices = @transform_2, window_bounds = array<i64: 1, 128>}, {pipeline_mode = #tpu.pipeline_mode<synchronous>, transform_indices = @transform_3, window_bounds = array<i64: 128, 128>}, {pipeline_mode = #tpu.pipeline_mode<synchronous>, transform_indices = @transform_4, window_bounds = array<i64: 1, 128>}, {pipeline_mode = #tpu.pipeline_mode<synchronous>, transform_indices = @transform_5, window_bounds = array<i64: 128, 128>}, {pipeline_mode = #tpu.pipeline_mode<synchronous>, transform_indices = @transform_6, window_bounds = array<i64: 1, 128>}, {transform_indices = @transform_7, window_bounds = array<i64: 8, 128>}]} {
    %c0 = arith.constant 0 : index
    %c0_0 = arith.constant 0 : index
    %0 = vector.load %arg1[%c0, %c0_0] : memref<8x128xf32, #tpu.memory_space<vmem>>, vector<8x128xf32>
    %c0_1 = arith.constant 0 : index
    %c0_2 = arith.constant 0 : index
    %1 = vector.load %arg2[%c0_1, %c0_2] : memref<128x128xbf16, #tpu.memory_space<vmem>>, vector<128x128xbf16>
    %c0_3 = arith.constant 0 : index
    %c0_4 = arith.constant 0 : index
    %2 = vector.load %arg3[%c0_3, %c0_4] : memref<1x128xf32, #tpu.memory_space<vmem>>, vector<1x128xf32>
    %3 = arith.truncf %0 : vector<8x128xf32> to vector<8x128xbf16>
    %cst = arith.constant dense<0.000000e+00> : vector<8x128xf32>
    %4 = tpu.matmul %3, %1, %cst {dimension_numbers = #tpu.dot_dimension_numbers<[1], [0], [0], [1], [0, 0, 1, 1], [], []>} : vector<8x128xbf16>, vector<128x128xbf16>, vector<8x128xf32> -> vector<8x128xf32>
    %5 = vector.broadcast %2 : vector<1x128xf32> to vector<8x128xf32>
    %6 = arith.addf %4, %5 : vector<8x128xf32>
    %cst_5 = arith.constant 0.000000e+00 : f32
    %7 = vector.broadcast %cst_5 : f32 to vector<8x128xf32>
    %8 = arith.maximumf %6, %7 : vector<8x128xf32>
    %c0_6 = arith.constant 0 : index
    %c0_7 = arith.constant 0 : index
    %9 = vector.load %arg4[%c0_6, %c0_7] : memref<128x128xbf16, #tpu.memory_space<vmem>>, vector<128x128xbf16>
    %c0_8 = arith.constant 0 : index
    %c0_9 = arith.constant 0 : index
    %10 = vector.load %arg5[%c0_8, %c0_9] : memref<1x128xf32, #tpu.memory_space<vmem>>, vector<1x128xf32>
    %11 = arith.truncf %8 : vector<8x128xf32> to vector<8x128xbf16>
    %cst_10 = arith.constant dense<0.000000e+00> : vector<8x128xf32>
    %12 = tpu.matmul %11, %9, %cst_10 {dimension_numbers = #tpu.dot_dimension_numbers<[1], [0], [0], [1], [0, 0, 1, 1], [], []>} : vector<8x128xbf16>, vector<128x128xbf16>, vector<8x128xf32> -> vector<8x128xf32>
    %13 = vector.broadcast %10 : vector<1x128xf32> to vector<8x128xf32>
    %14 = arith.addf %12, %13 : vector<8x128xf32>
    %cst_11 = arith.constant 0.000000e+00 : f32
    %15 = vector.broadcast %cst_11 : f32 to vector<8x128xf32>
    %16 = arith.maximumf %14, %15 : vector<8x128xf32>
    %c0_12 = arith.constant 0 : index
    %c0_13 = arith.constant 0 : index
    %17 = vector.load %arg6[%c0_12, %c0_13] : memref<128x128xbf16, #tpu.memory_space<vmem>>, vector<128x128xbf16>
    %c0_14 = arith.constant 0 : index
    %c0_15 = arith.constant 0 : index
    %18 = vector.load %arg7[%c0_14, %c0_15] : memref<1x128xf32, #tpu.memory_space<vmem>>, vector<1x128xf32>
    %19 = arith.truncf %16 : vector<8x128xf32> to vector<8x128xbf16>
    %cst_16 = arith.constant dense<0.000000e+00> : vector<8x128xf32>
    %20 = tpu.matmul %19, %17, %cst_16 {dimension_numbers = #tpu.dot_dimension_numbers<[1], [0], [0], [1], [0, 0, 1, 1], [], []>} : vector<8x128xbf16>, vector<128x128xbf16>, vector<8x128xf32> -> vector<8x128xf32>
    %21 = vector.broadcast %18 : vector<1x128xf32> to vector<8x128xf32>
    %22 = arith.addf %20, %21 : vector<8x128xf32>
    %c0_17 = arith.constant 0 : index
    %c0_18 = arith.constant 0 : index
    %23 = vector.load %arg8[%c0_17, %c0_18] : memref<8x128xf32, #tpu.memory_space<vmem>>, vector<8x128xf32>
    tpu.vector_store %arg8[%c0_17, %c0_18], %22 {strides = array<i32>} : memref<8x128xf32, #tpu.memory_space<vmem>>, vector<8x128xf32>,
    return
  }
  func.func @transform_0(%arg0: i32) -> (i32, i32) {
    %c0_i32 = arith.constant 0 : i32
    %c0_i32_0 = arith.constant 0 : i32
    return %arg0, %c0_i32 : i32, i32
  }
  func.func @transform_1(%arg0: i32) -> (i32, i32) {
    %c0_i32 = arith.constant 0 : i32
    %c0_i32_0 = arith.constant 0 : i32
    %c0_i32_1 = arith.constant 0 : i32
    return %c0_i32, %c0_i32_0 : i32, i32
  }
  func.func @transform_2(%arg0: i32) -> (i32, i32) {
    %c0_i32 = arith.constant 0 : i32
    %c0_i32_0 = arith.constant 0 : i32
    %c0_i32_1 = arith.constant 0 : i32
    return %c0_i32, %c0_i32_0 : i32, i32
  }
  func.func @transform_3(%arg0: i32) -> (i32, i32) {
    %c0_i32 = arith.constant 0 : i32
    %c0_i32_0 = arith.constant 0 : i32
    %c0_i32_1 = arith.constant 0 : i32
    return %c0_i32, %c0_i32_0 : i32, i32
  }
  func.func @transform_4(%arg0: i32) -> (i32, i32) {
    %c0_i32 = arith.constant 0 : i32
    %c0_i32_0 = arith.constant 0 : i32
    %c0_i32_1 = arith.constant 0 : i32
    return %c0_i32, %c0_i32_0 : i32, i32
  }
  func.func @transform_5(%arg0: i32) -> (i32, i32) {
    %c0_i32 = arith.constant 0 : i32
    %c0_i32_0 = arith.constant 0 : i32
    %c0_i32_1 = arith.constant 0 : i32
    return %c0_i32, %c0_i32_0 : i32, i32
  }
  func.func @transform_6(%arg0: i32) -> (i32, i32) {
    %c0_i32 = arith.constant 0 : i32
    %c0_i32_0 = arith.constant 0 : i32
    %c0_i32_1 = arith.constant 0 : i32
    return %c0_i32, %c0_i32_0 : i32, i32
  }
  func.func @transform_7(%arg0: i32) -> (i32, i32) {
    %c0_i32 = arith.constant 0 : i32
    %c0_i32_0 = arith.constant 0 : i32
    return %arg0, %c0_i32 : i32, i32
  }
}

</mosaic_0001>

<llo_original>
// kernel: net_encoder_forward.1
$region0: #{net_encoder_forward.1}
  #allocation0 [shape = 'u32[]', space=smem, size = 0x4, offset = 0x4, fixed_abs, tag = 'smem constant byte address 0x4 - core index']
  #allocation1 [shape = 'u32[144,128]{1,0:T(1,128)}', space=vmem, size = 0x12000, scoped, tag = 'internal scratch']
  %s0 = inlined_call_operand.vmem [shape: f32[8,128], index: 0, kind: input, shape index: {}]
  %s1 = inlined_call_operand.hbm [shape: bf16[128,128], index: 1, kind: input, shape index: {}]
  %s2 = inlined_call_operand.vmem [shape: f32[1,128], index: 2, kind: input, shape index: {}]
  %s3 = inlined_call_operand.hbm [shape: bf16[128,128], index: 3, kind: input, shape index: {}]
  %s4 = inlined_call_operand.vmem [shape: f32[1,128], index: 4, kind: input, shape index: {}]
  %s5 = inlined_call_operand.hbm [shape: bf16[128,128], index: 5, kind: input, shape index: {}]
  %s6 = inlined_call_operand.vmem [shape: f32[1,128], index: 6, kind: input, shape index: {}]
  %s7 = inlined_call_operand.vmem [shape: f32[8,128], index: 7, kind: output, shape index: {}]
  %s8 = sld [smem:[#allocation0]]
  $region50: #{net_encoder_forward.1} parent=0
    _
  %s10 = ssub.s32 1, %s8
  %s11 = scalar_select 0, %s10, %s8
  $region1: #{net_encoder_forward.1} parent=0
    #allocation2 [shape = 'u8[32768]{0}', space=vmem, size = 0x8000, scoped, tag = 'input window, operand 1, single buffered']
    #allocation3 [shape = 's32[1]{0}', space=sflag, size = 0x4, scoped, tag = 'scoped memory for net_encoder_forward.1']
    #allocation4 [shape = 'u8[32768]{0}', space=vmem, size = 0x8000, scoped, tag = 'input window, operand 3, single buffered']
    #allocation5 [shape = 's32[1]{0}', space=sflag, size = 0x4, scoped, tag = 'scoped memory for net_encoder_forward.1']
    #allocation6 [shape = 'u8[32768]{0}', space=vmem, size = 0x8000, scoped, tag = 'input window, operand 5, single buffered']
    %12 = vsyncpa [#allocation3], 0
    %13 = vsyncpa [#allocation5], 0
    // Predicated region
    $region2: #{net_encoder_forward.1} parent=1 // pred_check
      _
    $region3: #{net_encoder_forward.1} parent=1 // pred_check_branch
      %15 = sbr.rel (0) target = $region5
    $region4: #{net_encoder_forward.1} parent=1 // pred_region
      _
    $region5: #{net_encoder_forward.1} parent=1 // pred_fallthru
      _
    // Predicated region
    $region6: #{net_encoder_forward.1} parent=1 // pred_check
      _
    $region7: #{net_encoder_forward.1} parent=1 // pred_check_branch
      %17 = sbr.rel (0) target = $region9
    $region8: #{net_encoder_forward.1} parent=1 // pred_region
      %s19 = ssub.s32 1024, 1024
      %20 = vsyncadd [#allocation3], %s19
      %s21 = sshll.u32 [#allocation2], 4
      %s22 = int_to_ptr.vmem [resolvable:$true] %s21
      %27 = dma.hbm_to_vmem [thread:$0]  %s1, 1024, %s22, [#allocation3], 64, 64, 4
    $region9: #{net_encoder_forward.1} parent=1 // pred_fallthru
      _
    // Predicated region
    $region10: #{net_encoder_forward.1} parent=1 // pred_check
      _
    $region11: #{net_encoder_forward.1} parent=1 // pred_check_branch
      %29 = sbr.rel (0) target = $region13
    $region12: #{net_encoder_forward.1} parent=1 // pred_region
      _
    $region13: #{net_encoder_forward.1} parent=1 // pred_fallthru
      _
    // Predicated region
    $region14: #{net_encoder_forward.1} parent=1 // pred_check
      _
    $region15: #{net_encoder_forward.1} parent=1 // pred_check_branch
      %31 = sbr.rel (0) target = $region17
    $region16: #{net_encoder_forward.1} parent=1 // pred_region
      %s33 = ssub.s32 1024, 1024
      %34 = vsyncadd [#allocation5], %s33
      %s35 = sshll.u32 [#allocation4], 4
      %s36 = int_to_ptr.vmem [resolvable:$true] %s35
      %41 = dma.hbm_to_vmem [thread:$0]  %s3, 1024, %s36, [#allocation5], 64, 64, 4
    $region17: #{net_encoder_forward.1} parent=1 // pred_fallthru
      _
    // Predicated region
    $region18: #{net_encoder_forward.1} parent=1 // pred_check
      _
    $region19: #{net_encoder_forward.1} parent=1 // pred_check_branch
      %43 = sbr.rel (0) target = $region21
    $region20: #{net_encoder_forward.1} parent=1 // pred_region
      _
    $region21: #{net_encoder_forward.1} parent=1 // pred_fallthru
      _
    // Predicated region
    $region22: #{net_encoder_forward.1} parent=1 // pred_check
      _
    $region23: #{net_encoder_forward.1} parent=1 // pred_check_branch
      %45 = sbr.rel (0) target = $region25
    $region24: #{net_encoder_forward.1} parent=1 // pred_region
      %s47 = ssub.s32 1024, 1024
      %48 = vsyncadd [#allocation5], %s47
      %s49 = sshll.u32 [#allocation6], 4
      %s50 = int_to_ptr.vmem [resolvable:$true] %s49
      %55 = dma.hbm_to_vmem [thread:$0]  %s5, 1024, %s50, [#allocation5], 64, 64, 4
    $region25: #{net_encoder_forward.1} parent=1 // pred_fallthru
      _
    // Predicated region
    $region26: #{net_encoder_forward.1} parent=1 // pred_check
      _
    $region27: #{net_encoder_forward.1} parent=1 // pred_check_branch
      %57 = sbr.rel (0) target = $region29
    $region28: #{net_encoder_forward.1} parent=1 // pred_region
      _
    $region29: #{net_encoder_forward.1} parent=1 // pred_fallthru
      _
    // Predicated region
    $region30: #{net_encoder_forward.1} parent=1 // pred_check
      _
    $region31: #{net_encoder_forward.1} parent=1 // pred_check_branch
      %59 = sbr.rel (0) target = $region33
    $region32: #{net_encoder_forward.1} parent=1 // pred_region
      %60 = dma.done [#allocation3], 1024
    $region33: #{net_encoder_forward.1} parent=1 // pred_fallthru
      _
    // Predicated region
    $region34: #{net_encoder_forward.1} parent=1 // pred_check
      _
    $region35: #{net_encoder_forward.1} parent=1 // pred_check_branch
      %62 = sbr.rel (0) target = $region37
    $region36: #{net_encoder_forward.1} parent=1 // pred_region
      %63 = dma.done [#allocation5], 1024
    $region37: #{net_encoder_forward.1} parent=1 // pred_fallthru
      _
    // Predicated region
    $region38: #{net_encoder_forward.1} parent=1 // pred_check
      _
    $region39: #{net_encoder_forward.1} parent=1 // pred_check_branch
      %65 = sbr.rel (0) target = $region41
    $region40: #{net_encoder_forward.1} parent=1 // pred_region
      %66 = dma.done [#allocation5], 1024
    $region41: #{net_encoder_forward.1} parent=1 // pred_fallthru
      _
    %v68 = vld [vmem:[%s0] sm:$0xff]
    %v69 = vld [vmem:[#allocation2] sm:$0xf]
    %v70 = vld [vmem:[#allocation2 + $0x4] sm:$0xf]
    %v71 = vld [vmem:[#allocation2 + $0x8] sm:$0xf]
    %v72 = vld [vmem:[#allocation2 + $0xc] sm:$0xf]
    %v73 = vld [vmem:[#allocation2 + $0x10] sm:$0xf]
    %v74 = vld [vmem:[#allocation2 + $0x14] sm:$0xf]
    %v75 = vld [vmem:[#allocation2 + $0x18] sm:$0xf]
    %v76 = vld [vmem:[#allocation2 + $0x1c] sm:$0xf]
    %v77 = vld [vmem:[#allocation2 + $0x20] sm:$0xf]
    %v78 = vld [vmem:[#allocation2 + $0x24] sm:$0xf]
    %v79 = vld [vmem:[#allocation2 + $0x28] sm:$0xf]
    %v80 = vld [vmem:[#allocation2 + $0x2c] sm:$0xf]
    %v81 = vld [vmem:[#allocation2 + $0x30] sm:$0xf]
    %v82 = vld [vmem:[#allocation2 + $0x34] sm:$0xf]
    %v83 = vld [vmem:[#allocation2 + $0x38] sm:$0xf]
    %v84 = vld [vmem:[#allocation2 + $0x3c] sm:$0xf]
    %v85 = vld [vmem:[%s2] sm:$0x1]
    %v86 = vpack.c.bf16 %v68, %v68
    %v88 = vlaneseq
    %v89 = vshrl.u32 %v88, 7
    %v90 = vsub.s32 0, %v89
    %v91 = vrot.slane %v85, %v90
    %v109 = vunpack.c.l.b16 %v69
    %v110 = vunpack.c.l.b16 %v70
    %v111 = vunpack.c.l.b16 %v71
    %v112 = vunpack.c.l.b16 %v72
    %v113 = vunpack.c.l.b16 %v73
    %v114 = vunpack.c.l.b16 %v74
    %v115 = vunpack.c.l.b16 %v75
    %v116 = vunpack.c.l.b16 %v76
    %v117 = vunpack.c.l.b16 %v77
    %v118 = vunpack.c.l.b16 %v78
    %v119 = vunpack.c.l.b16 %v79
    %v120 = vunpack.c.l.b16 %v80
    %v121 = vunpack.c.l.b16 %v81
    %v122 = vunpack.c.l.b16 %v82
    %v123 = vunpack.c.l.b16 %v83
    %v124 = vunpack.c.l.b16 %v84
    %v125 = vpack.c.b16 %v110, %v109
    %v126 = vpack.c.b16 %v112, %v111
    %v127 = vpack.c.b16 %v114, %v113
    %v128 = vpack.c.b16 %v116, %v115
    %v129 = vpack.c.b16 %v118, %v117
    %v130 = vpack.c.b16 %v120, %v119
    %v131 = vpack.c.b16 %v122, %v121
    %v132 = vpack.c.b16 %v124, %v123
    %141 = vmatprep.subr.bf16.mxu0 0
    %142 = vmatpush1.bf16.msra.mxu0 %v125
    %143 = vmatprep.subr.bf16.mxu0 0
    %144 = vmatpush1.bf16.msra.mxu0 %v126
    %145 = vmatprep.subr.bf16.mxu0 0
    %146 = vmatpush1.bf16.msra.mxu0 %v127
    %147 = vmatprep.subr.bf16.mxu0 0
    %148 = vmatpush1.bf16.msra.mxu0 %v128
    %149 = vmatprep.subr.bf16.mxu0 0
    %150 = vmatpush1.bf16.msra.mxu0 %v129
    %151 = vmatprep.subr.bf16.mxu0 0
    %152 = vmatpush1.bf16.msra.mxu0 %v130
    %153 = vmatprep.subr.bf16.mxu0 0
    %154 = vmatpush1.bf16.msra.mxu0 %v131
    %155 = vmatprep.subr.bf16.mxu0 0
    %156 = vmatpush1.bf16.msra.mxu0 %v132
    %157 = vmatprep.subr.bf16.mxu0 0
    %158 = vmatpush1.bf16.msra.mxu0 0
    %159 = vmatprep.subr.bf16.mxu0 0
    %160 = vmatpush1.bf16.msra.mxu0 0
    %161 = vmatprep.subr.bf16.mxu0 0
    %162 = vmatpush1.bf16.msra.mxu0 0
    %163 = vmatprep.subr.bf16.mxu0 0
    %164 = vmatpush1.bf16.msra.mxu0 0
    %165 = vmatprep.subr.bf16.mxu0 0
    %166 = vmatpush1.bf16.msra.mxu0 0
    %167 = vmatprep.subr.bf16.mxu0 0
    %168 = vmatpush1.bf16.msra.mxu0 0
    %169 = vmatprep.subr.bf16.mxu0 0
    %170 = vmatpush1.bf16.msra.mxu0 0
    %171 = vmatprep.subr.bf16.mxu0 0
    %172 = vmatpush1.bf16.msra.mxu0 0
    %173 = vmatprep.mubr.bf16.mxu0 0
    %174 = vmatmul.mubr.bf16.gmra.mrb[0].mxu0 %v86
    %v175 = vpop.f32.mrb[0].mxu0
    %v176 = vadd.f32 %v91, %v175
    %v177 = vpop.f32.mrb[0].mxu0
    %v178 = vpop.f32.mrb[0].mxu0
    %v179 = vpop.f32.mrb[0].mxu0
    %180 = vdwg.mxu0
    %v181 = vmax.f32 %v176, 0.0
    %v182 = vld [vmem:[#allocation4] sm:$0xf]
    %v183 = vld [vmem:[#allocation4 + $0x4] sm:$0xf]
    %v184 = vld [vmem:[#allocation4 + $0x8] sm:$0xf]
    %v185 = vld [vmem:[#allocation4 + $0xc] sm:$0xf]
    %v186 = vld [vmem:[#allocation4 + $0x10] sm:$0xf]
    %v187 = vld [vmem:[#allocation4 + $0x14] sm:$0xf]
    %v188 = vld [vmem:[#allocation4 + $0x18] sm:$0xf]
    %v189 = vld [vmem:[#allocation4 + $0x1c] sm:$0xf]
    %v190 = vld [vmem:[#allocation4 + $0x20] sm:$0xf]
    %v191 = vld [vmem:[#allocation4 + $0x24] sm:$0xf]
    %v192 = vld [vmem:[#allocation4 + $0x28] sm:$0xf]
    %v193 = vld [vmem:[#allocation4 + $0x2c] sm:$0xf]
    %v194 = vld [vmem:[#allocation4 + $0x30] sm:$0xf]
    %v195 = vld [vmem:[#allocation4 + $0x34] sm:$0xf]
    %v196 = vld [vmem:[#allocation4 + $0x38] sm:$0xf]
    %v197 = vld [vmem:[#allocation4 + $0x3c] sm:$0xf]
    %v198 = vld [vmem:[%s4] sm:$0x1]
    %v199 = vpack.c.bf16 %v181, %v181
    %v201 = vlaneseq
    %v202 = vshrl.u32 %v201, 7
    %v203 = vsub.s32 0, %v202
    %v204 = vrot.slane %v198, %v203
    %v222 = vunpack.c.l.b16 %v182
    %v223 = vunpack.c.l.b16 %v183
    %v224 = vunpack.c.l.b16 %v184
    %v225 = vunpack.c.l.b16 %v185
    %v226 = vunpack.c.l.b16 %v186
    %v227 = vunpack.c.l.b16 %v187
    %v228 = vunpack.c.l.b16 %v188
    %v229 = vunpack.c.l.b16 %v189
    %v230 = vunpack.c.l.b16 %v190
    %v231 = vunpack.c.l.b16 %v191
    %v232 = vunpack.c.l.b16 %v192
    %v233 = vunpack.c.l.b16 %v193
    %v234 = vunpack.c.l.b16 %v194
    %v235 = vunpack.c.l.b16 %v195
    %v236 = vunpack.c.l.b16 %v196
    %v237 = vunpack.c.l.b16 %v197
    %v238 = vpack.c.b16 %v223, %v222
    %v239 = vpack.c.b16 %v225, %v224
    %v240 = vpack.c.b16 %v227, %v226
    %v241 = vpack.c.b16 %v229, %v228
    %v242 = vpack.c.b16 %v231, %v230
    %v243 = vpack.c.b16 %v233, %v232
    %v244 = vpack.c.b16 %v235, %v234
    %v245 = vpack.c.b16 %v237, %v236
    %254 = vmatprep.subr.bf16.mxu0 0
    %255 = vmatpush1.bf16.msra.mxu0 %v238
    %256 = vmatprep.subr.bf16.mxu0 0
    %257 = vmatpush1.bf16.msra.mxu0 %v239
    %258 = vmatprep.subr.bf16.mxu0 0
    %259 = vmatpush1.bf16.msra.mxu0 %v240
    %260 = vmatprep.subr.bf16.mxu0 0
    %261 = vmatpush1.bf16.msra.mxu0 %v241
    %262 = vmatprep.subr.bf16.mxu0 0
    %263 = vmatpush1.bf16.msra.mxu0 %v242
    %264 = vmatprep.subr.bf16.mxu0 0
    %265 = vmatpush1.bf16.msra.mxu0 %v243
    %266 = vmatprep.subr.bf16.mxu0 0
    %267 = vmatpush1.bf16.msra.mxu0 %v244
    %268 = vmatprep.subr.bf16.mxu0 0
    %269 = vmatpush1.bf16.msra.mxu0 %v245
    %270 = vmatprep.subr.bf16.mxu0 0
    %271 = vmatpush1.bf16.msra.mxu0 0
    %272 = vmatprep.subr.bf16.mxu0 0
    %273 = vmatpush1.bf16.msra.mxu0 0
    %274 = vmatprep.subr.bf16.mxu0 0
    %275 = vmatpush1.bf16.msra.mxu0 0
    %276 = vmatprep.subr.bf16.mxu0 0
    %277 = vmatpush1.bf16.msra.mxu0 0
    %278 = vmatprep.subr.bf16.mxu0 0
    %279 = vmatpush1.bf16.msra.mxu0 0
    %280 = vmatprep.subr.bf16.mxu0 0
    %281 = vmatpush1.bf16.msra.mxu0 0
    %282 = vmatprep.subr.bf16.mxu0 0
    %283 = vmatpush1.bf16.msra.mxu0 0
    %284 = vmatprep.subr.bf16.mxu0 0
    %285 = vmatpush1.bf16.msra.mxu0 0
    %286 = vmatprep.mubr.bf16.mxu0 0
    %287 = vmatmul.mubr.bf16.gmra.mrb[0].mxu0 %v199
    %v288 = vpop.f32.mrb[0].mxu0
    %v289 = vadd.f32 %v204, %v288
    %v290 = vpop.f32.mrb[0].mxu0
    %v291 = vpop.f32.mrb[0].mxu0
    %v292 = vpop.f32.mrb[0].mxu0
    %293 = vdwg.mxu0
    %v294 = vmax.f32 %v289, 0.0
    %v295 = vld [vmem:[#allocation6] sm:$0xf]
    %v296 = vld [vmem:[#allocation6 + $0x4] sm:$0xf]
    %v297 = vld [vmem:[#allocation6 + $0x8] sm:$0xf]
    %v298 = vld [vmem:[#allocation6 + $0xc] sm:$0xf]
    %v299 = vld [vmem:[#allocation6 + $0x10] sm:$0xf]
    %v300 = vld [vmem:[#allocation6 + $0x14] sm:$0xf]
    %v301 = vld [vmem:[#allocation6 + $0x18] sm:$0xf]
    %v302 = vld [vmem:[#allocation6 + $0x1c] sm:$0xf]
    %v303 = vld [vmem:[#allocation6 + $0x20] sm:$0xf]
    %v304 = vld [vmem:[#allocation6 + $0x24] sm:$0xf]
    %v305 = vld [vmem:[#allocation6 + $0x28] sm:$0xf]
    %v306 = vld [vmem:[#allocation6 + $0x2c] sm:$0xf]
    %v307 = vld [vmem:[#allocation6 + $0x30] sm:$0xf]
    %v308 = vld [vmem:[#allocation6 + $0x34] sm:$0xf]
    %v309 = vld [vmem:[#allocation6 + $0x38] sm:$0xf]
    %v310 = vld [vmem:[#allocation6 + $0x3c] sm:$0xf]
    %v311 = vld [vmem:[%s6] sm:$0x1]
    %v312 = vpack.c.bf16 %v294, %v294
    %v314 = vlaneseq
    %v315 = vshrl.u32 %v314, 7
    %v316 = vsub.s32 0, %v315
    %v317 = vrot.slane %v311, %v316
    %v335 = vunpack.c.l.b16 %v295
    %v336 = vunpack.c.l.b16 %v296
    %v337 = vunpack.c.l.b16 %v297
    %v338 = vunpack.c.l.b16 %v298
    %v339 = vunpack.c.l.b16 %v299
    %v340 = vunpack.c.l.b16 %v300
    %v341 = vunpack.c.l.b16 %v301
    %v342 = vunpack.c.l.b16 %v302
    %v343 = vunpack.c.l.b16 %v303
    %v344 = vunpack.c.l.b16 %v304
    %v345 = vunpack.c.l.b16 %v305
    %v346 = vunpack.c.l.b16 %v306
    %v347 = vunpack.c.l.b16 %v307
    %v348 = vunpack.c.l.b16 %v308
    %v349 = vunpack.c.l.b16 %v309
    %v350 = vunpack.c.l.b16 %v310
    %v351 = vpack.c.b16 %v336, %v335
    %v352 = vpack.c.b16 %v338, %v337
    %v353 = vpack.c.b16 %v340, %v339
    %v354 = vpack.c.b16 %v342, %v341
    %v355 = vpack.c.b16 %v344, %v343
    %v356 = vpack.c.b16 %v346, %v345
    %v357 = vpack.c.b16 %v348, %v347
    %v358 = vpack.c.b16 %v350, %v349
    %367 = vmatprep.subr.bf16.mxu0 0
    %368 = vmatpush1.bf16.msra.mxu0 %v351
    %369 = vmatprep.subr.bf16.mxu0 0
    %370 = vmatpush1.bf16.msra.mxu0 %v352
    %371 = vmatprep.subr.bf16.mxu0 0
    %372 = vmatpush1.bf16.msra.mxu0 %v353
    %373 = vmatprep.subr.bf16.mxu0 0
    %374 = vmatpush1.bf16.msra.mxu0 %v354
    %375 = vmatprep.subr.bf16.mxu0 0
    %376 = vmatpush1.bf16.msra.mxu0 %v355
    %377 = vmatprep.subr.bf16.mxu0 0
    %378 = vmatpush1.bf16.msra.mxu0 %v356
    %379 = vmatprep.subr.bf16.mxu0 0
    %380 = vmatpush1.bf16.msra.mxu0 %v357
    %381 = vmatprep.subr.bf16.mxu0 0
    %382 = vmatpush1.bf16.msra.mxu0 %v358
    %383 = vmatprep.subr.bf16.mxu0 0
    %384 = vmatpush1.bf16.msra.mxu0 0
    %385 = vmatprep.subr.bf16.mxu0 0
    %386 = vmatpush1.bf16.msra.mxu0 0
    %387 = vmatprep.subr.bf16.mxu0 0
    %388 = vmatpush1.bf16.msra.mxu0 0
    %389 = vmatprep.subr.bf16.mxu0 0
    %390 = vmatpush1.bf16.msra.mxu0 0
    %391 = vmatprep.subr.bf16.mxu0 0
    %392 = vmatpush1.bf16.msra.mxu0 0
    %393 = vmatprep.subr.bf16.mxu0 0
    %394 = vmatpush1.bf16.msra.mxu0 0
    %395 = vmatprep.subr.bf16.mxu0 0
    %396 = vmatpush1.bf16.msra.mxu0 0
    %397 = vmatprep.subr.bf16.mxu0 0
    %398 = vmatpush1.bf16.msra.mxu0 0
    %399 = vmatprep.mubr.bf16.mxu0 0
    %400 = vmatmul.mubr.bf16.gmra.mrb[0].mxu0 %v312
    %v401 = vpop.f32.mrb[0].mxu0
    %v402 = vadd.f32 %v317, %v401
    %v403 = vpop.f32.mrb[0].mxu0
    %v404 = vpop.f32.mrb[0].mxu0
    %v405 = vpop.f32.mrb[0].mxu0
    %406 = vdwg.mxu0
    %407 = vst [vmem:[%s7] sm:$0xff] %v402
    // Predicated region
    $region42: #{net_encoder_forward.1} parent=1 // pred_check
      _
    $region43: #{net_encoder_forward.1} parent=1 // pred_check_branch
      %409 = sbr.rel (0) target = $region45
    $region44: #{net_encoder_forward.1} parent=1 // pred_region
      _
    $region45: #{net_encoder_forward.1} parent=1 // pred_fallthru
      _
    // Predicated region
    $region46: #{net_encoder_forward.1} parent=1 // pred_check
      _
    $region47: #{net_encoder_forward.1} parent=1 // pred_check_branch
      %411 = sbr.rel (0) target = $region49
    $region48: #{net_encoder_forward.1} parent=1 // pred_region
      _
    $region49: #{net_encoder_forward.1} parent=1 // pred_fallthru
      _
    %412 = vsyncpa [#allocation3], 1
    %413 = vsyncpa [#allocation5], 1

</llo_original>
